<compile_context>
chip_gen: v7x
topology: tpu7x:2x2x1
jax: 0.10.0
libtpu: 0.0.40
codegen_flags: <defaults>
</compile_context>

<pallas_src>
import jax
import jax.numpy as jnp
from jax import lax
from jax.experimental import pallas as pl
from jax.experimental.pallas import tpu as pltpu


C_IN = 3      # RGB input channels (mean/std buffers have 3 entries)
C1 = 8        # channels after layer 1
C2 = 16       # channels after layer 2
EPS = 1e-10   # matches normalize_activation eps

CHUNK = 1024          # in-kernel lane strip (keeps h1/h2 in vregs, no spills)
TM_CAP = 65536        # lane-tile ceiling (review: 49152-65536)


def _round_up(x, m):
    return ((x + m - 1) // m) * m


def _vmem_capacity_bytes():
    """Per-generation VMEM capacity; conservative 64 MiB fallback (v7x)."""
    try:
        info = pltpu.get_tpu_info()
        cap = getattr(info, "vmem_capacity_bytes", None)
        if cap:
            return int(cap)
    except Exception:
        pass
    return 64 * 1024 * 1024


def _choose_tile(hw, n, out_bytes, vmem_budget):
    """Largest lane tile that keeps double-buffered streams inside budget."""
    # Double-buffered in/out stream bytes per lane (+30% slack for temps).
    per_lane = 2 * (C_IN * 4 + (C1 + C2) * out_bytes)
    tm = int(vmem_budget * 0.7) // per_lane
    tm = min(tm, TM_CAP)
    if n == 1 and hw > 256:
        # v7x has 2 TensorCores: keep >=2 spatial tiles so both get work.
        tm = min(tm, _round_up(-(-hw // 2), 128))
    if tm >= hw:
        return hw                       # full extent -> always layout-legal
    return max(128, (tm // 128) * 128)  # multiple of 128 -> layout-legal


def basenet_kernel(x_ref, w1_ref, b1_ref, w2_ref, b2_ref, out1_ref, out2_ref):
    # x_ref: (C_IN, TM) tile of one image's flattened spatial axis.
    w1 = w1_ref[...]
    b1 = b1_ref[...]
    w2 = w2_ref[...]
    b2 = b2_ref[...]
    tm = x_ref.shape[-1]

    def process(off, size):
        x = x_ref[:, pl.ds(off, size)].astype(jnp.float32)

        # ---- layer 1: 1x1 conv (channel-mixing matmul, z_score folded) + ReLU
        h1 = jnp.dot(w1, x, preferred_element_type=jnp.float32) + b1
        h1 = jnp.maximum(h1, 0.0)
        # ---- normalize_activation(h1): L2 over channels; rsqrt on the EUP.
        inv1 = lax.rsqrt(jnp.sum(h1 * h1, axis=0, keepdims=True) + EPS * EPS)
        out1_ref[:, pl.ds(off, size)] = (h1 * inv1).astype(out1_ref.dtype)

        # ---- layer 2: 1x1 conv + ReLU (takes un-normalized h1, as in spec)
        h2 = jnp.dot(w2, h1, preferred_element_type=jnp.float32) + b2
        h2 = jnp.maximum(h2, 0.0)
        inv2 = lax.rsqrt(jnp.sum(h2 * h2, axis=0, keepdims=True) + EPS * EPS)
        out2_ref[:, pl.ds(off, size)] = (h2 * inv2).astype(out2_ref.dtype)

    n_full = tm // CHUNK
    if n_full > 0:
        def body(c, carry):
            off = pl.multiple_of(c * CHUNK, CHUNK)
            process(off, CHUNK)
            return carry
        lax.fori_loop(0, n_full, body, 0, unroll=min(n_full, 4))
    rem = tm - n_full * CHUNK
    if rem > 0:
        process(n_full * CHUNK, rem)


def basenet_forward(x_nchw, params, out_dtype=jnp.float32):
    """x_nchw: (N, C_IN, H, W).  Returns [out1, out2] in NCHW (out_dtype)."""
    N, C, H, W = x_nchw.shape
    assert C == C_IN
    HW = H * W

    out_bytes = jnp.dtype(out_dtype).itemsize
    vmem_budget = min((_vmem_capacity_bytes() * 3) // 4, 96 * 1024 * 1024)
    TM = _choose_tile(HW, N, out_bytes, vmem_budget)
    n_tiles = pl.cdiv(HW, TM)

    mean, std, w1, b1, w2, b2 = params

    # Fold z_score into layer 1:  w1' = w1 * (1/std)^T,  b1' = b1 - w1 @ (mean/std)
    inv_std = 1.0 / std                                  # (C_IN, 1)
    w1_eff = w1 * inv_std.reshape(1, C_IN)               # (C1, C_IN)
    b1_eff = b1 - jnp.dot(w1, mean * inv_std)            # (C1, 1)

    # Free NCHW -> (N, C, H*W) view; no HBM traffic.
    x_3d = x_nchw.reshape(N, C_IN, HW)

    const_spec = lambda shape: pl.BlockSpec(shape, lambda n, i: (0, 0))

    out1_3d, out2_3d = pl.pallas_call(
        basenet_kernel,
        out_shape=(jax.ShapeDtypeStruct((N, C1, HW), out_dtype),
                   jax.ShapeDtypeStruct((N, C2, HW), out_dtype)),
        grid_spec=pltpu.PrefetchScalarGridSpec(
            num_scalar_prefetch=0,
            grid=(N, n_tiles),
            in_specs=[
                pl.BlockSpec((None, C_IN, TM), lambda n, i: (n, 0, i)),  # x tile
                const_spec((C1, C_IN)),                                  # w1'
                const_spec((C1, 1)),                                     # b1'
                const_spec((C2, C1)),                                    # w2
                const_spec((C2, 1)),                                     # b2
            ],
            out_specs=[
                pl.BlockSpec((None, C1, TM), lambda n, i: (n, 0, i)),
                pl.BlockSpec((None, C2, TM), lambda n, i: (n, 0, i)),
            ],
        ),
        compiler_params=pltpu.CompilerParams(
            dimension_semantics=("parallel", "parallel"),
            vmem_limit_bytes=int(vmem_budget)),
    )(x_3d, w1_eff, b1_eff, w2, b2)

    # Free (N, C, H*W) -> NCHW views.
    return [out1_3d.reshape(N, C1, H, W), out2_3d.reshape(N, C2, H, W)]


def make_params():
    # Buffers exactly as in BaseNet.__init__
    mean = jnp.array([-0.03, -0.088, -0.188], jnp.float32).reshape(C_IN, 1)
    std = jnp.array([0.458, 0.448, 0.45], jnp.float32).reshape(C_IN, 1)
    # Deterministic synthetic layer weights (stand-in for subclass layers)
    k = jax.random.PRNGKey(0)
    k1, k2, k3, k4 = jax.random.split(k, 4)
    w1 = jax.random.normal(k1, (C1, C_IN), jnp.float32) * 0.3
    b1 = jax.random.normal(k2, (C1, 1), jnp.float32) * 0.1
    w2 = jax.random.normal(k3, (C2, C1), jnp.float32) * 0.3
    b2 = jax.random.normal(k4, (C2, 1), jnp.float32) * 0.1
    return mean, std, w1, b1, w2, b2


def reference_forward(x_nchw, params):
    """Pure-JAX reference mirroring the PyTorch semantics."""
    mean, std, w1, b1, w2, b2 = params
    hi = jax.lax.Precision.HIGHEST
    x = (x_nchw - mean.reshape(1, C_IN, 1, 1)) / std.reshape(1, C_IN, 1, 1)
    h1 = jnp.einsum('oc,nchw->nohw', w1, x, precision=hi) + b1.reshape(1, C1, 1, 1)
    h1 = jnp.maximum(h1, 0.0)
    n1 = jnp.sqrt(jnp.sum(h1 ** 2, axis=1, keepdims=True))
    o1 = h1 / (n1 + EPS)
    h2 = jnp.einsum('oc,nchw->nohw', w2, h1, precision=hi) + b2.reshape(1, C2, 1, 1)
    h2 = jnp.maximum(h2, 0.0)
    n2 = jnp.sqrt(jnp.sum(h2 ** 2, axis=1, keepdims=True))
    o2 = h2 / (n2 + EPS)
    return [o1, o2]


def _check(x, params, out_dtype, tol):
    outs = basenet_forward(x, params, out_dtype=out_dtype)
    outs = [jax.block_until_ready(o) for o in outs]
    refs = reference_forward(x, params)
    for o, r in zip(outs, refs):
        assert o.shape == r.shape and o.dtype == out_dtype
        err = jnp.max(jnp.abs(o.astype(jnp.float32) - r))
        assert err < tol, f"max abs err {err} >= {tol} (dtype={out_dtype})"


if __name__ == "__main__":
    params = make_params()
    key = jax.random.PRNGKey(0)
    k1, k2 = jax.random.split(key)

    # Primary small case (f32 outputs, tight tolerance).
    x = jax.random.uniform(k1, (2, 3, 16, 16), jnp.float32, -1.0, 1.0)
    _check(x, params, jnp.float32, 1e-4)

    # bf16-output fast path (write-bound kernel: ~1.8x fewer HBM bytes).
    _check(x, params, jnp.bfloat16, 1e-2)

    # Exercise N==1 tile splitting, in-kernel chunk loop, and ragged last block.
    x2 = jax.random.uniform(k2, (1, 3, 70, 70), jnp.float32, -1.0, 1.0)
    _check(x2, params, jnp.float32, 1e-4)

    print("KERNEL_OK")
</pallas_src>

<mosaic_0001>
module attributes {stable_mosaic.version = 11 : i64} {
  func.func @basenet_kernel(%arg0: i32, %arg1: i32, %arg2: memref<1x3x256xf32, #tpu.memory_space<vmem>>, %arg3: memref<8x3xf32, #tpu.memory_space<vmem>>, %arg4: memref<8x1xf32, #tpu.memory_space<vmem>>, %arg5: memref<16x8xf32, #tpu.memory_space<vmem>>, %arg6: memref<16x1xf32, #tpu.memory_space<vmem>>, %arg7: memref<1x8x256xf32, #tpu.memory_space<vmem>>, %arg8: memref<1x16x256xf32, #tpu.memory_space<vmem>>) attributes {dimension_semantics = [#tpu.dimension_semantics<parallel>, #tpu.dimension_semantics<parallel>], iteration_bounds = array<i64: 2, 1>, scalar_prefetch = 0 : i64, scratch_operands = 0 : i64, tpu.core_type = #tpu.core_type<tc>, window_params = [{transform_indices = @transform_0, window_bounds = array<i64: 1, 3, 256>}, {pipeline_mode = #tpu.pipeline_mode<synchronous>, transform_indices = @transform_1, window_bounds = array<i64: 8, 3>}, {pipeline_mode = #tpu.pipeline_mode<synchronous>, transform_indices = @transform_2, window_bounds = array<i64: 8, 1>}, {pipeline_mode = #tpu.pipeline_mode<synchronous>, transform_indices = @transform_3, window_bounds = array<i64: 16, 8>}, {pipeline_mode = #tpu.pipeline_mode<synchronous>, transform_indices = @transform_4, window_bounds = array<i64: 16, 1>}, {transform_indices = @transform_5, window_bounds = array<i64: 1, 8, 256>}, {transform_indices = @transform_6, window_bounds = array<i64: 1, 16, 256>}]} {
    %c0 = arith.constant 0 : index
    %c0_0 = arith.constant 0 : index
    %0 = vector.load %arg3[%c0, %c0_0] : memref<8x3xf32, #tpu.memory_space<vmem>>, vector<8x3xf32>
    %c0_1 = arith.constant 0 : index
    %c0_2 = arith.constant 0 : index
    %1 = vector.load %arg4[%c0_1, %c0_2] : memref<8x1xf32, #tpu.memory_space<vmem>>, vector<8x1xf32>
    %c0_3 = arith.constant 0 : index
    %c0_4 = arith.constant 0 : index
    %2 = vector.load %arg5[%c0_3, %c0_4] : memref<16x8xf32, #tpu.memory_space<vmem>>, vector<16x8xf32>
    %c0_5 = arith.constant 0 : index
    %c0_6 = arith.constant 0 : index
    %3 = vector.load %arg6[%c0_5, %c0_6] : memref<16x1xf32, #tpu.memory_space<vmem>>, vector<16x1xf32>
    %c0_7 = arith.constant 0 : index
    %c0_8 = arith.constant 0 : index
    %c0_9 = arith.constant 0 : index
    %4 = vector.load %arg2[%c0_7, %c0_8, %c0_9] : memref<1x3x256xf32, #tpu.memory_space<vmem>>, vector<1x3x256xf32>
    %5 = vector.shape_cast %4 : vector<1x3x256xf32> to vector<3x256xf32>
    %cst = arith.constant dense<0.000000e+00> : vector<8x256xf32>
    %6 = tpu.matmul %0, %5, %cst {dimension_numbers = #tpu.dot_dimension_numbers<[1], [0], [0], [1], [0, 0, 1, 1], [], []>} : vector<8x3xf32>, vector<3x256xf32>, vector<8x256xf32> -> vector<8x256xf32>
    %7 = vector.broadcast %1 : vector<8x1xf32> to vector<8x256xf32>
    %8 = arith.addf %6, %7 : vector<8x256xf32>
    %cst_10 = arith.constant 0.000000e+00 : f32
    %9 = vector.broadcast %cst_10 : f32 to vector<8x256xf32>
    %10 = arith.maximumf %8, %9 : vector<8x256xf32>
    %11 = arith.mulf %10, %10 : vector<8x256xf32>
    %cst_11 = arith.constant dense<0.000000e+00> : vector<256xf32>
    %12 = vector.multi_reduction <add>, %11, %cst_11 [0] : vector<8x256xf32> to vector<256xf32>
    %13 = vector.shape_cast %12 : vector<256xf32> to vector<1x256xf32>
    %cst_12 = arith.constant 9.99999968E-21 : f32
    %14 = vector.broadcast %cst_12 : f32 to vector<1x256xf32>
    %15 = arith.addf %13, %14 : vector<1x256xf32>
    %16 = math.rsqrt %15 : vector<1x256xf32>
    %17 = vector.broadcast %16 : vector<1x256xf32> to vector<8x256xf32>
    %18 = arith.mulf %10, %17 : vector<8x256xf32>
    %c0_13 = arith.constant 0 : index
    %c0_14 = arith.constant 0 : index
    %c0_15 = arith.constant 0 : index
    %19 = vector.load %arg7[%c0_13, %c0_14, %c0_15] : memref<1x8x256xf32, #tpu.memory_space<vmem>>, vector<1x8x256xf32>
    %20 = vector.shape_cast %19 : vector<1x8x256xf32> to vector<8x256xf32>
    %21 = vector.shape_cast %18 : vector<8x256xf32> to vector<1x8x256xf32>
    tpu.vector_store %arg7[%c0_13, %c0_14, %c0_15], %21 {strides = array<i32>} : memref<1x8x256xf32, #tpu.memory_space<vmem>>, vector<1x8x256xf32>,
    %cst_16 = arith.constant dense<0.000000e+00> : vector<16x256xf32>
    %22 = tpu.matmul %2, %10, %cst_16 {dimension_numbers = #tpu.dot_dimension_numbers<[1], [0], [0], [1], [0, 0, 1, 1], [], []>} : vector<16x8xf32>, vector<8x256xf32>, vector<16x256xf32> -> vector<16x256xf32>
    %23 = vector.broadcast %3 : vector<16x1xf32> to vector<16x256xf32>
    %24 = arith.addf %22, %23 : vector<16x256xf32>
    %cst_17 = arith.constant 0.000000e+00 : f32
    %25 = vector.broadcast %cst_17 : f32 to vector<16x256xf32>
    %26 = arith.maximumf %24, %25 : vector<16x256xf32>
    %27 = arith.mulf %26, %26 : vector<16x256xf32>
    %cst_18 = arith.constant dense<0.000000e+00> : vector<256xf32>
    %28 = vector.multi_reduction <add>, %27, %cst_18 [0] : vector<16x256xf32> to vector<256xf32>
    %29 = vector.shape_cast %28 : vector<256xf32> to vector<1x256xf32>
    %cst_19 = arith.constant 9.99999968E-21 : f32
    %30 = vector.broadcast %cst_19 : f32 to vector<1x256xf32>
    %31 = arith.addf %29, %30 : vector<1x256xf32>
    %32 = math.rsqrt %31 : vector<1x256xf32>
    %33 = vector.broadcast %32 : vector<1x256xf32> to vector<16x256xf32>
    %34 = arith.mulf %26, %33 : vector<16x256xf32>
    %c0_20 = arith.constant 0 : index
    %c0_21 = arith.constant 0 : index
    %c0_22 = arith.constant 0 : index
    %35 = vector.load %arg8[%c0_20, %c0_21, %c0_22] : memref<1x16x256xf32, #tpu.memory_space<vmem>>, vector<1x16x256xf32>
    %36 = vector.shape_cast %35 : vector<1x16x256xf32> to vector<16x256xf32>
    %37 = vector.shape_cast %34 : vector<16x256xf32> to vector<1x16x256xf32>
    tpu.vector_store %arg8[%c0_20, %c0_21, %c0_22], %37 {strides = array<i32>} : memref<1x16x256xf32, #tpu.memory_space<vmem>>, vector<1x16x256xf32>,
    return
  }
  func.func @transform_0(%arg0: i32, %arg1: i32) -> (i32, i32, i32) {
    %c0_i32 = arith.constant 0 : i32
    %c0_i32_0 = arith.constant 0 : i32
    return %arg0, %c0_i32, %arg1 : i32, i32, i32
  }
  func.func @transform_1(%arg0: i32, %arg1: i32) -> (i32, i32) {
    %c0_i32 = arith.constant 0 : i32
    %c0_i32_0 = arith.constant 0 : i32
    %c0_i32_1 = arith.constant 0 : i32
    return %c0_i32, %c0_i32_0 : i32, i32
  }
  func.func @transform_2(%arg0: i32, %arg1: i32) -> (i32, i32) {
    %c0_i32 = arith.constant 0 : i32
    %c0_i32_0 = arith.constant 0 : i32
    %c0_i32_1 = arith.constant 0 : i32
    return %c0_i32, %c0_i32_0 : i32, i32
  }
  func.func @transform_3(%arg0: i32, %arg1: i32) -> (i32, i32) {
    %c0_i32 = arith.constant 0 : i32
    %c0_i32_0 = arith.constant 0 : i32
    %c0_i32_1 = arith.constant 0 : i32
    return %c0_i32, %c0_i32_0 : i32, i32
  }
  func.func @transform_4(%arg0: i32, %arg1: i32) -> (i32, i32) {
    %c0_i32 = arith.constant 0 : i32
    %c0_i32_0 = arith.constant 0 : i32
    %c0_i32_1 = arith.constant 0 : i32
    return %c0_i32, %c0_i32_0 : i32, i32
  }
  func.func @transform_5(%arg0: i32, %arg1: i32) -> (i32, i32, i32) {
    %c0_i32 = arith.constant 0 : i32
    %c0_i32_0 = arith.constant 0 : i32
    return %arg0, %c0_i32, %arg1 : i32, i32, i32
  }
  func.func @transform_6(%arg0: i32, %arg1: i32) -> (i32, i32, i32) {
    %c0_i32 = arith.constant 0 : i32
    %c0_i32_0 = arith.constant 0 : i32
    return %arg0, %c0_i32, %arg1 : i32, i32, i32
  }
}

</mosaic_0001>

<llo_original>
// kernel: tpu_custom_call.1
$region0: #{tpu_custom_call.1}
  #allocation0 [shape = 'u32[]', space=smem, size = 0x4, offset = 0x4, fixed_abs, tag = 'smem constant byte address 0x4 - core index']
  #allocation1 [shape = 'u32[144,128]{1,0:T(1,128)}', space=vmem, size = 0x12000, scoped, tag = 'internal scratch']
  %s0 = inlined_call_operand.vmem [shape: f32[2,3,256], index: 0, kind: input, shape index: {}]
  %s1 = inlined_call_operand.vmem [shape: f32[8,3], index: 1, kind: input, shape index: {}]
  %s2 = inlined_call_operand.vmem [shape: f32[8,1], index: 2, kind: input, shape index: {}]
  %s3 = inlined_call_operand.vmem [shape: f32[16,8], index: 3, kind: input, shape index: {}]
  %s4 = inlined_call_operand.vmem [shape: f32[16,1], index: 4, kind: input, shape index: {}]
  %s5 = inlined_call_operand.hbm [shape: f32[2,8,256], index: 5, kind: output, shape index: {0}]
  %s6 = inlined_call_operand.hbm [shape: f32[2,16,256], index: 6, kind: output, shape index: {1}]
  %7 = xla_tuple %s5, %s6
  %s8 = sld [smem:[#allocation0]]
  $region61: #{tpu_custom_call.1} parent=0
    _
  %s10 = ssub.s32 1, %s8
  %s11 = scalar_select 0, %s10, %s8
  $region1: #{tpu_custom_call.1} parent=0
    #allocation2 [shape = 'u8[16384]{0}', space=vmem, size = 0x4000, scoped, tag = 'output window, operand 0']
    #allocation3 [shape = 's32[2]{0}', space=sflag, size = 0x8, scoped, tag = 'scoped memory for tpu_custom_call.1']
    #allocation4 [shape = 'u8[32768]{0}', space=vmem, size = 0x8000, scoped, tag = 'output window, operand 1']
    #allocation5 [shape = 's32[2]{0}', space=sflag, size = 0x8, scoped, tag = 'scoped memory for tpu_custom_call.1']
    %12 = vsyncpa [#allocation3], 0
    %s13 = scalar_lea.sflag [#allocation3], 1
    %14 = vsyncpa %s13, 0
    %15 = vsyncpa [#allocation5], 0
    %s16 = scalar_lea.sflag [#allocation5], 1
    %17 = vsyncpa %s16, 0
    loop: start=0, step=1, limit=4
    $region2: #{tpu_custom_call.1} parent=1 // loop_pre_header
      _
    $region3: #{tpu_custom_call.1} parent=1 // loop_header
      %s19 = sphi 0, %s23
      %p20 = scmp.ge.s32.totalorder %s19, 4
      %s26 = sphi 0, %s38
      %s27 = sphi 0, %s34
      %s28 = sphi 0, %s26
      %s29 = sphi 0, %s27
      %s30 = sphi 0, %s28
      %s31 = sphi 0, %s29
      %s43 = sphi 0, %s45
      %s46 = sphi 0, %s43
      %s47 = sphi 0, %s46
      %s63 = sphi 0, %s47
      %s67 = sphi 0, %s67
      %s69 = sphi 0, %s67
      %s70 = sphi 0, %s69
      %s84 = sphi 0, %s70
      %s88 = sphi 0, %s88
      %s90 = sphi 0, %s88
      %s91 = sphi 0, %s90
      %s105 = sphi 0, %s91
      %s109 = sphi 0, %s109
      %s111 = sphi 0, %s109
      %s112 = sphi 0, %s111
      %s126 = sphi 0, %s112
      %s130 = sphi 0, %s130
      %s132 = sphi 0, %s130
      %s133 = sphi 0, %s132
      %s147 = sphi 0, %s133
      %s155 = sphi 0, %s157
      %s158 = sphi 0, %s155
      %s159 = sphi 0, %s158
      %s175 = sphi 0, %s159
      %s183 = sphi 0, %s185
      %s186 = sphi 0, %s183
      %s187 = sphi 0, %s186
      %s203 = sphi 0, %s187
    $region4: #{tpu_custom_call.1} parent=1 // loop_header_branch
      %22 = sbr.rel (%p20) target = $region8
    $region5: #{tpu_custom_call.1} parent=1 // loop_body
      %s24 = ssub.s32 %s19, 1
      %s25 = ssub.s32 %s19, 2
      %s32 = sadd.s32 1, %s27
      %p33 = scmp.ge.s32.totalorder %s32, 1
      %s34 = scalar_select %p33, 0, %s32
      %s35 = sadd.s32 1, %s26
      %s36 = scalar_select %p33, %s35, %s26
      %p37 = scmp.ge.s32.totalorder %s36, 2
      %s38 = scalar_select %p37, 0, %s36
      %s39 = ssub.s32 %s26, %s38
      %s40 = ssub.s32 %s27, %s34
      %s41 = sor.u32 %s39, %s40
      %p42 = scmp.eq.s32.totalorder %s41, 0
      %s44 = sadd.s32 %s43, 1
      %s45 = scalar_select %p42, %s43, %s44
      %p48 = pneg %p42
      %p49 = scmp.eq.s32.totalorder %s19, 1
      %p50 = por %p48, %p49
      %p51 = scmp.ne.s32.totalorder %s43, %s46
      %p52 = scmp.eq.s32.totalorder %s19, 0
      %p53 = por %p51, %p52
      %p54 = scmp.ne.s32.totalorder %s43, %s46
      %p55 = scmp.eq.s32.totalorder %s24, 1
      %p56 = por %p54, %p55
      %p57 = scmp.ne.s32.totalorder %s46, %s47
      %p58 = scmp.eq.s32.totalorder %s24, 0
      %p59 = por %p57, %p58
      %p60 = scmp.ne.s32.totalorder %s46, %s47
      %p61 = scmp.eq.s32.totalorder %s25, 1
      %p62 = por %p60, %p61
      %p64 = scmp.ne.s32.totalorder %s47, %s63
      %p65 = scmp.eq.s32.totalorder %s25, 0
      %p66 = por %p64, %p65
      %s68 = sadd.s32 %s67, 1
      %p71 = scmp.eq.s32.totalorder %s19, 1
      %p72 = scmp.ne.s32.totalorder %s67, %s69
      %p73 = scmp.eq.s32.totalorder %s19, 0
      %p74 = por %p72, %p73
      %p75 = scmp.ne.s32.totalorder %s67, %s69
      %p76 = scmp.eq.s32.totalorder %s24, 1
      %p77 = por %p75, %p76
      %p78 = scmp.ne.s32.totalorder %s69, %s70
      %p79 = scmp.eq.s32.totalorder %s24, 0
      %p80 = por %p78, %p79
      %p81 = scmp.ne.s32.totalorder %s69, %s70
      %p82 = scmp.eq.s32.totalorder %s25, 1
      %p83 = por %p81, %p82
      %p85 = scmp.ne.s32.totalorder %s70, %s84
      %p86 = scmp.eq.s32.totalorder %s25, 0
      %p87 = por %p85, %p86
      %s89 = sadd.s32 %s88, 1
      %p92 = scmp.eq.s32.totalorder %s19, 1
      %p93 = scmp.ne.s32.totalorder %s88, %s90
      %p94 = scmp.eq.s32.totalorder %s19, 0
      %p95 = por %p93, %p94
      %p96 = scmp.ne.s32.totalorder %s88, %s90
      %p97 = scmp.eq.s32.totalorder %s24, 1
      %p98 = por %p96, %p97
      %p99 = scmp.ne.s32.totalorder %s90, %s91
      %p100 = scmp.eq.s32.totalorder %s24, 0
      %p101 = por %p99, %p100
      %p102 = scmp.ne.s32.totalorder %s90, %s91
      %p103 = scmp.eq.s32.totalorder %s25, 1
      %p104 = por %p102, %p103
      %p106 = scmp.ne.s32.totalorder %s91, %s105
      %p107 = scmp.eq.s32.totalorder %s25, 0
      %p108 = por %p106, %p107
      %s110 = sadd.s32 %s109, 1
      %p113 = scmp.eq.s32.totalorder %s19, 1
      %p114 = scmp.ne.s32.totalorder %s109, %s111
      %p115 = scmp.eq.s32.totalorder %s19, 0
      %p116 = por %p114, %p115
      %p117 = scmp.ne.s32.totalorder %s109, %s111
      %p118 = scmp.eq.s32.totalorder %s24, 1
      %p119 = por %p117, %p118
      %p120 = scmp.ne.s32.totalorder %s111, %s112
      %p121 = scmp.eq.s32.totalorder %s24, 0
      %p122 = por %p120, %p121
      %p123 = scmp.ne.s32.totalorder %s111, %s112
      %p124 = scmp.eq.s32.totalorder %s25, 1
      %p125 = por %p123, %p124
      %p127 = scmp.ne.s32.totalorder %s112, %s126
      %p128 = scmp.eq.s32.totalorder %s25, 0
      %p129 = por %p127, %p128
      %s131 = sadd.s32 %s130, 1
      %p134 = scmp.eq.s32.totalorder %s19, 1
      %p135 = scmp.ne.s32.totalorder %s130, %s132
      %p136 = scmp.eq.s32.totalorder %s19, 0
      %p137 = por %p135, %p136
      %p138 = scmp.ne.s32.totalorder %s130, %s132
      %p139 = scmp.eq.s32.totalorder %s24, 1
      %p140 = por %p138, %p139
      %p141 = scmp.ne.s32.totalorder %s132, %s133
      %p142 = scmp.eq.s32.totalorder %s24, 0
      %p143 = por %p141, %p142
      %p144 = scmp.ne.s32.totalorder %s132, %s133
      %p145 = scmp.eq.s32.totalorder %s25, 1
      %p146 = por %p144, %p145
      %p148 = scmp.ne.s32.totalorder %s133, %s147
      %p149 = scmp.eq.s32.totalorder %s25, 0
      %p150 = por %p148, %p149
      %s151 = ssub.s32 %s26, %s38
      %s152 = ssub.s32 %s27, %s34
      %s153 = sor.u32 %s151, %s152
      %p154 = scmp.eq.s32.totalorder %s153, 0
      %s156 = sadd.s32 %s155, 1
      %s157 = scalar_select %p154, %s155, %s156
      %p160 = pneg %p154
      %p161 = scmp.eq.s32.totalorder %s19, 1
      %p162 = por %p160, %p161
      %p163 = scmp.ne.s32.totalorder %s155, %s158
      %p164 = scmp.eq.s32.totalorder %s19, 0
      %p165 = por %p163, %p164
      %p166 = scmp.ne.s32.totalorder %s155, %s158
      %p167 = scmp.eq.s32.totalorder %s24, 1
      %p168 = por %p166, %p167
      %p169 = scmp.ne.s32.totalorder %s158, %s159
      %p170 = scmp.eq.s32.totalorder %s24, 0
      %p171 = por %p169, %p170
      %p172 = scmp.ne.s32.totalorder %s158, %s159
      %p173 = scmp.eq.s32.totalorder %s25, 1
      %p174 = por %p172, %p173
      %p176 = scmp.ne.s32.totalorder %s159, %s175
      %p177 = scmp.eq.s32.totalorder %s25, 0
      %p178 = por %p176, %p177
      %s179 = ssub.s32 %s26, %s38
      %s180 = ssub.s32 %s27, %s34
      %s181 = sor.u32 %s179, %s180
      %p182 = scmp.eq.s32.totalorder %s181, 0
      %s184 = sadd.s32 %s183, 1
      %s185 = scalar_select %p182, %s183, %s184
      %p188 = pneg %p182
      %p189 = scmp.eq.s32.totalorder %s19, 1
      %p190 = por %p188, %p189
      %p191 = scmp.ne.s32.totalorder %s183, %s186
      %p192 = scmp.eq.s32.totalorder %s19, 0
      %p193 = por %p191, %p192
      %p194 = scmp.ne.s32.totalorder %s183, %s186
      %p195 = scmp.eq.s32.totalorder %s24, 1
      %p196 = por %p194, %p195
      %p197 = scmp.ne.s32.totalorder %s186, %s187
      %p198 = scmp.eq.s32.totalorder %s24, 0
      %p199 = por %p197, %p198
      %p200 = scmp.ne.s32.totalorder %s186, %s187
      %p201 = scmp.eq.s32.totalorder %s25, 1
      %p202 = por %p200, %p201
      %p204 = scmp.ne.s32.totalorder %s187, %s203
      %p205 = scmp.eq.s32.totalorder %s25, 0
      %p206 = por %p204, %p205
      %p207 = scmp.le.s32.totalorder 1, %s19
      %p208 = scmp.lt.s32.totalorder %s19, 3
      %p209 = pnand %p207, %p208
      %p210 = pneg %p209
      // Predicated region
      $region9: #{tpu_custom_call.1} parent=5 // pred_check
        _
      $region10: #{tpu_custom_call.1} parent=5 // pred_check_branch
        %212 = sbr.rel (%p209) target = $region12
      $region11: #{tpu_custom_call.1} parent=5 // pred_region
        %s213 = ssub.s32 %s19, 1
        // Predicated region
        $region13: #{tpu_custom_call.1} parent=11 // pred_check
          %p214 = pneg %p80
        $region14: #{tpu_custom_call.1} parent=11 // pred_check_branch
          %216 = sbr.rel (%p214) target = $region16
        $region15: #{tpu_custom_call.1} parent=11 // pred_region
          _
        $region16: #{tpu_custom_call.1} parent=11 // pred_fallthru
          _
        // Predicated region
        $region17: #{tpu_custom_call.1} parent=11 // pred_check
          %p217 = pneg %p101
        $region18: #{tpu_custom_call.1} parent=11 // pred_check_branch
          %219 = sbr.rel (%p217) target = $region20
        $region19: #{tpu_custom_call.1} parent=11 // pred_region
          _
        $region20: #{tpu_custom_call.1} parent=11 // pred_fallthru
          _
        // Predicated region
        $region21: #{tpu_custom_call.1} parent=11 // pred_check
          %p220 = pneg %p122
        $region22: #{tpu_custom_call.1} parent=11 // pred_check_branch
          %222 = sbr.rel (%p220) target = $region24
        $region23: #{tpu_custom_call.1} parent=11 // pred_region
          _
        $region24: #{tpu_custom_call.1} parent=11 // pred_fallthru
          _
        // Predicated region
        $region25: #{tpu_custom_call.1} parent=11 // pred_check
          %p223 = pneg %p143
        $region26: #{tpu_custom_call.1} parent=11 // pred_check_branch
          %225 = sbr.rel (%p223) target = $region28
        $region27: #{tpu_custom_call.1} parent=11 // pred_region
          _
        $region28: #{tpu_custom_call.1} parent=11 // pred_fallthru
          _
      $region12: #{tpu_custom_call.1} parent=5 // pred_fallthru
        _
      %p226 = scmp.lt.s32.totalorder %s19, 2
      // Predicated region
      $region29: #{tpu_custom_call.1} parent=5 // pred_check
        %p227 = pneg %p226
      $region30: #{tpu_custom_call.1} parent=5 // pred_check_branch
        %229 = sbr.rel (%p227) target = $region32
      $region31: #{tpu_custom_call.1} parent=5 // pred_region
        // Predicated region
        $region33: #{tpu_custom_call.1} parent=31 // pred_check
          %p230 = pneg %p53
        $region34: #{tpu_custom_call.1} parent=31 // pred_check_branch
          %232 = sbr.rel (%p230) target = $region36
        $region35: #{tpu_custom_call.1} parent=31 // pred_region
          %s233 = smul.u32 2, %s27
          %p234 = scmp.lt.s32.totalorder %s26, 1
          %s235 = scalar_select %p234, %s26, 1
          %p236 = scmp.lt.s32.totalorder %s233, 1
          %s237 = scalar_select %p236, %s233, 1
          %s238 = smul.addr %s235, 2
          %s239 = sadd.s32 %s237, %s238
          %s240 = smul.addr %s239, 4
          %s241 = scalar_lea.vmem %s0, %s240
          %s242 = smul.u32 2, %s27
        $region36: #{tpu_custom_call.1} parent=31 // pred_fallthru
          _
      $region32: #{tpu_custom_call.1} parent=5 // pred_fallthru
        _
      %p243 = scmp.le.s32.totalorder 1, %s19
      %p244 = scmp.lt.s32.totalorder %s19, 3
      %p245 = pnand %p243, %p244
      %p246 = pneg %p245
      // Predicated region
      $region37: #{tpu_custom_call.1} parent=5 // pred_check
        _
      $region38: #{tpu_custom_call.1} parent=5 // pred_check_branch
        %248 = sbr.rel (%p245) target = $region40
      $region39: #{tpu_custom_call.1} parent=5 // pred_region
        %s249 = ssub.s32 %s19, 1
        %s250 = smul.u32 2, %s29
        %p251 = scmp.lt.s32.totalorder %s28, 1
        %s252 = scalar_select %p251, %s28, 1
        %p253 = scmp.lt.s32.totalorder %s250, 1
        %s254 = scalar_select %p253, %s250, 1
        %s255 = smul.addr %s252, 2
        %s256 = sadd.s32 %s254, %s255
        %s257 = smul.addr %s256, 4
        %s258 = scalar_lea.vmem %s0, %s257
        %p259 = pneg %p59
        %p260 = pneg %p56
        %p261 = pneg %p80
        %p262 = pneg %p77
        %p263 = pneg %p101
        %p264 = pneg %p98
        %p265 = pneg %p122
        %p266 = pneg %p119
        %p267 = pneg %p143
        %p268 = pneg %p140
        %p269 = pneg %p171
        %p270 = pneg %p168
        %s271 = sand.u32 %s158, 1
        %s272 = scalar_lea.sflag [#allocation3], %s271
        %s273 = sand.u32 %s158, 1
        %s274 = smul.addr %s273, 16
        %s275 = scalar_lea.vmem [#allocation2], %s274
        %p276 = pneg %p199
        %p277 = pneg %p196
        %s278 = sand.u32 %s186, 1
        %s279 = scalar_lea.sflag [#allocation5], %s278
        %s280 = sand.u32 %s186, 1
        %s281 = smul.addr %s280, 32
        %s282 = scalar_lea.vmem [#allocation4], %s281
        %s283 = smul.u32 2, %s29
        %p284 = scmp.lt.s32.totalorder %s28, 1
        %s285 = scalar_select %p284, %s28, 1
        %p286 = scmp.lt.s32.totalorder %s283, 1
        %s287 = scalar_select %p286, %s283, 1
        %s288 = smul.addr %s285, 2
        %s289 = sadd.s32 %s287, %s288
        %s290 = smul.addr %s289, 4
        %s291 = scalar_lea.vmem %s0, %s290
        %s292 = smul.u32 2, %s29
        %s293 = smul.u32 2, %s29
        %s294 = smul.u32 2, %s29
        %v295 = vld [vmem:[%s1] sm:$0xff]
        %v296 = vld [vmem:[%s2] sm:$0xff]
        %v297 = vld [vmem:[%s3] sm:$0xff]
        %v298 = vld [vmem:[%s3 + $0x8] sm:$0xff]
        %v299 = vld [vmem:[%s4] sm:$0xff]
        %v300 = vld [vmem:[%s4 + $0x8] sm:$0xff]
        %v301 = vld [vmem:[%s291] sm:$0x77]
        %303 = vset.pattern.permute.xlu0 0
        %304 = vperm.xlu0 %303, %v296
        %v305 = vpop.permute.xlu0 %304
        %v308 = vcombine.high %v301, %v301
        %vm309 = vcmask 23552
        %v311 = vsel %vm309, %v295, 0
        %vm313 = vcmask 1042432
        %v314 = vsel %vm313, %v301, 0
        %v316 = vsel %vm313, %v308, 0
        %318 = vmatprep.subr.mxu0 %v316
        %319 = vmatpush1.msra.mxu0 %v314
        %320 = vmatprep.subr.mxu0 0.0
        %321 = vmatpush1.msra.mxu0 0.0
        %322 = vmatprep.subr.mxu0 0.0
        %323 = vmatpush1.msra.mxu0 0.0
        %324 = vmatprep.subr.mxu0 0.0
        %325 = vmatpush1.msra.mxu0 0.0
        %326 = vmatprep.subr.mxu0 0.0
        %327 = vmatpush1.msra.mxu0 0.0
        %328 = vmatprep.subr.mxu0 0.0
        %329 = vmatpush1.msra.mxu0 0.0
        %330 = vmatprep.subr.mxu0 0.0
        %331 = vmatpush1.msra.mxu0 0.0
        %332 = vmatprep.subr.mxu0 0.0
        %333 = vmatpush1.msra.mxu0 0.0
        %334 = vmatprep.subr.mxu0 0.0
        %335 = vmatpush1.msra.mxu0 0.0
        %336 = vmatprep.subr.mxu0 0.0
        %337 = vmatpush1.msra.mxu0 0.0
        %338 = vmatprep.subr.mxu0 0.0
        %339 = vmatpush1.msra.mxu0 0.0
        %340 = vmatprep.subr.mxu0 0.0
        %341 = vmatpush1.msra.mxu0 0.0
        %342 = vmatprep.subr.mxu0 0.0
        %343 = vmatpush1.msra.mxu0 0.0
        %344 = vmatprep.subr.mxu0 0.0
        %345 = vmatpush1.msra.mxu0 0.0
        %346 = vmatprep.subr.mxu0 0.0
        %347 = vmatpush1.msra.mxu0 0.0
        %348 = vmatprep.subr.mxu0 0.0
        %349 = vmatpush1.msra.mxu0 0.0
        %350 = vmatprep.subr.mxu0 0.0
        %351 = vmatpush1.msra.mxu0 0.0
        %352 = vmatprep.subr.mxu0 0.0
        %353 = vmatpush1.msra.mxu0 0.0
        %354 = vmatprep.subr.mxu0 0.0
        %355 = vmatpush1.msra.mxu0 0.0
        %356 = vmatprep.subr.mxu0 0.0
        %357 = vmatpush1.msra.mxu0 0.0
        %358 = vmatprep.subr.mxu0 0.0
        %359 = vmatpush1.msra.mxu0 0.0
        %360 = vmatprep.subr.mxu0 0.0
        %361 = vmatpush1.msra.mxu0 0.0
        %362 = vmatprep.subr.mxu0 0.0
        %363 = vmatpush1.msra.mxu0 0.0
        %364 = vmatprep.subr.mxu0 0.0
        %365 = vmatpush1.msra.mxu0 0.0
        %366 = vmatprep.subr.mxu0 0.0
        %367 = vmatpush1.msra.mxu0 0.0
        %368 = vmatprep.subr.mxu0 0.0
        %369 = vmatpush1.msra.mxu0 0.0
        %370 = vmatprep.subr.mxu0 0.0
        %371 = vmatpush1.msra.mxu0 0.0
        %372 = vmatprep.subr.mxu0 0.0
        %373 = vmatpush1.msra.mxu0 0.0
        %374 = vmatprep.subr.mxu0 0.0
        %375 = vmatpush1.msra.mxu0 0.0
        %376 = vmatprep.subr.mxu0 0.0
        %377 = vmatpush1.msra.mxu0 0.0
        %378 = vmatprep.subr.mxu0 0.0
        %379 = vmatpush1.msra.mxu0 0.0
        %380 = vmatprep.subr.mxu0 0.0
        %381 = vmatpush1.msra.mxu0 0.0
        %382 = vmatprep.mubr.f32.mxu0 0.0
        %383 = vmatmul.mubr.f32.gmra.mrb[0].mxu0 %v311
        %v384 = vpop.f32.mrb[0].mxu0
        %v385 = vadd.f32 %v305, %v384
        %v386 = vpop.f32.mrb[0].mxu0
        %v387 = vadd.f32 %v305, %v386
        %388 = vdwg.mxu0
        %v389 = vmax.f32 %v385, 0.0
        %v390 = vmax.f32 %v387, 0.0
        %v391 = vmul.f32 %v389, %v389
        %v392 = vmul.f32 %v390, %v390
        %v393 = vrot.slane %v391, 4
        %v394 = vadd.f32 %v391, %v393
        %v395 = vrot.slane %v394, 2
        %v396 = vadd.f32 %v394, %v395
        %v397 = vrot.slane %v396, 1
        %v398 = vadd.f32 %v396, %v397
        %v399 = vrot.slane %v392, 4
        %v400 = vadd.f32 %v392, %v399
        %v401 = vrot.slane %v400, 2
        %v402 = vadd.f32 %v400, %v401
        %v403 = vrot.slane %v402, 1
        %v404 = vadd.f32 %v402, %v403
        %v405 = vadd.f32 %v398, 1e-20
        %v406 = vadd.f32 %v404, 1e-20
        %v407 = vrsqrt.pop %v405
        %v408 = vrsqrt.pop %v406
        %v409 = vmul.f32 %v389, %v407
        %v410 = vmul.f32 %v390, %v408
        %411 = vst [vmem:[%s275] sm:$0xff] %v409
        %412 = vst [vmem:[%s275 + $0x8] sm:$0xff] %v410
        %414 = vset.pattern.permute.xlu0 0
        %415 = vperm.xlu0 %414, %v299
        %v416 = vpop.permute.xlu0 %415
        %419 = vset.pattern.permute.xlu0 0
        %420 = vperm.xlu0 %419, %v300
        %v421 = vpop.permute.xlu0 %420
        %vm423 = vcmask 64512
        %v425 = vsel %vm423, %v297, 0
        %v428 = vsel %vm423, %v298, 0
        %430 = vmatprep.subr.mxu0 %v390
        %431 = vmatpush1.msra.mxu0 %v389
        %432 = vmatprep.subr.mxu0 0.0
        %433 = vmatpush1.msra.mxu0 0.0
        %434 = vmatprep.subr.mxu0 0.0
        %435 = vmatpush1.msra.mxu0 0.0
        %436 = vmatprep.subr.mxu0 0.0
        %437 = vmatpush1.msra.mxu0 0.0
        %438 = vmatprep.subr.mxu0 0.0
        %439 = vmatpush1.msra.mxu0 0.0
        %440 = vmatprep.subr.mxu0 0.0
        %441 = vmatpush1.msra.mxu0 0.0
        %442 = vmatprep.subr.mxu0 0.0
        %443 = vmatpush1.msra.mxu0 0.0
        %444 = vmatprep.subr.mxu0 0.0
        %445 = vmatpush1.msra.mxu0 0.0
        %446 = vmatprep.subr.mxu0 0.0
        %447 = vmatpush1.msra.mxu0 0.0
        %448 = vmatprep.subr.mxu0 0.0
        %449 = vmatpush1.msra.mxu0 0.0
        %450 = vmatprep.subr.mxu0 0.0
        %451 = vmatpush1.msra.mxu0 0.0
        %452 = vmatprep.subr.mxu0 0.0
        %453 = vmatpush1.msra.mxu0 0.0
        %454 = vmatprep.subr.mxu0 0.0
        %455 = vmatpush1.msra.mxu0 0.0
        %456 = vmatprep.subr.mxu0 0.0
        %457 = vmatpush1.msra.mxu0 0.0
        %458 = vmatprep.subr.mxu0 0.0
        %459 = vmatpush1.msra.mxu0 0.0
        %460 = vmatprep.subr.mxu0 0.0
        %461 = vmatpush1.msra.mxu0 0.0
        %462 = vmatprep.subr.mxu0 0.0
        %463 = vmatpush1.msra.mxu0 0.0
        %464 = vmatprep.subr.mxu0 0.0
        %465 = vmatpush1.msra.mxu0 0.0
        %466 = vmatprep.subr.mxu0 0.0
        %467 = vmatpush1.msra.mxu0 0.0
        %468 = vmatprep.subr.mxu0 0.0
        %469 = vmatpush1.msra.mxu0 0.0
        %470 = vmatprep.subr.mxu0 0.0
        %471 = vmatpush1.msra.mxu0 0.0
        %472 = vmatprep.subr.mxu0 0.0
        %473 = vmatpush1.msra.mxu0 0.0
        %474 = vmatprep.subr.mxu0 0.0
        %475 = vmatpush1.msra.mxu0 0.0
        %476 = vmatprep.subr.mxu0 0.0
        %477 = vmatpush1.msra.mxu0 0.0
        %478 = vmatprep.subr.mxu0 0.0
        %479 = vmatpush1.msra.mxu0 0.0
        %480 = vmatprep.subr.mxu0 0.0
        %481 = vmatpush1.msra.mxu0 0.0
        %482 = vmatprep.subr.mxu0 0.0
        %483 = vmatpush1.msra.mxu0 0.0
        %484 = vmatprep.subr.mxu0 0.0
        %485 = vmatpush1.msra.mxu0 0.0
        %486 = vmatprep.subr.mxu0 0.0
        %487 = vmatpush1.msra.mxu0 0.0
        %488 = vmatprep.subr.mxu0 0.0
        %489 = vmatpush1.msra.mxu0 0.0
        %490 = vmatprep.subr.mxu0 0.0
        %491 = vmatpush1.msra.mxu0 0.0
        %492 = vmatprep.subr.mxu0 0.0
        %493 = vmatpush1.msra.mxu0 0.0
        %494 = vmatprep.mubr.f32.mxu0 0.0
        %495 = vmatmul.mubr.f32.gmra.mrb[0].mxu0 %v425
        %v496 = vpop.f32.mrb[0].mxu0
        %v497 = vadd.f32 %v416, %v496
        %v498 = vpop.f32.mrb[0].mxu0
        %v499 = vadd.f32 %v416, %v498
        %500 = vmatprep.mubr.f32.mxu0 0.0
        %501 = vmatmul.mubr.f32.gmra.mrb[0].mxu0 %v428
        %v502 = vpop.f32.mrb[0].mxu0
        %v503 = vadd.f32 %v421, %v502
        %v504 = vpop.f32.mrb[0].mxu0
        %v505 = vadd.f32 %v421, %v504
        %506 = vdwg.mxu0
        %v507 = vmax.f32 %v497, 0.0
        %v508 = vmax.f32 %v499, 0.0
        %v509 = vmax.f32 %v503, 0.0
        %v510 = vmax.f32 %v505, 0.0
        %v511 = vmul.f32 %v507, %v507
        %v512 = vmul.f32 %v508, %v508
        %v513 = vmul.f32 %v509, %v509
        %v514 = vmul.f32 %v510, %v510
        %v515 = vadd.f32 %v511, %v513
        %v516 = vrot.slane %v515, 4
        %v517 = vadd.f32 %v515, %v516
        %v518 = vrot.slane %v517, 2
        %v519 = vadd.f32 %v517, %v518
        %v520 = vrot.slane %v519, 1
        %v521 = vadd.f32 %v519, %v520
        %v522 = vadd.f32 %v512, %v514
        %v523 = vrot.slane %v522, 4
        %v524 = vadd.f32 %v522, %v523
        %v525 = vrot.slane %v524, 2
        %v526 = vadd.f32 %v524, %v525
        %v527 = vrot.slane %v526, 1
        %v528 = vadd.f32 %v526, %v527
        %v529 = vadd.f32 %v521, 1e-20
        %v530 = vadd.f32 %v528, 1e-20
        %v531 = vrsqrt.pop %v529
        %v532 = vrsqrt.pop %v530
        %v533 = vmul.f32 %v507, %v531
        %v534 = vmul.f32 %v508, %v532
        %v535 = vmul.f32 %v509, %v531
        %v536 = vmul.f32 %v510, %v532
        %537 = vst [vmem:[%s282] sm:$0xff] %v533
        %538 = vst [vmem:[%s282 + $0x8] sm:$0xff] %v534
        %539 = vst [vmem:[%s282 + $0x10] sm:$0xff] %v535
        %540 = vst [vmem:[%s282 + $0x18] sm:$0xff] %v536
        %s541 = sand.u32 %s158, 1
        %s542 = scalar_lea.sflag [#allocation3], %s541
        %s543 = sand.u32 %s158, 1
        %s544 = smul.addr %s543, 16
        %s545 = scalar_lea.vmem [#allocation2], %s544
        %s546 = sand.u32 %s186, 1
        %s547 = scalar_lea.sflag [#allocation5], %s546
        %s548 = sand.u32 %s186, 1
        %s549 = smul.addr %s548, 32
        %s550 = scalar_lea.vmem [#allocation4], %s549
        // Predicated region
        $region41: #{tpu_custom_call.1} parent=39 // pred_check
          %p551 = pneg %p168
        $region42: #{tpu_custom_call.1} parent=39 // pred_check_branch
          %553 = sbr.rel (%p551) target = $region44
        $region43: #{tpu_custom_call.1} parent=39 // pred_region
          %s554 = smul.u32 2, %s29
          %s556 = ssub.s32 256, 256
          %557 = vsyncadd %s542, %s556
          %s558 = smul.addr %s28, 2
          %s559 = sadd.s32 %s554, %s558
          %s560 = smul.addr %s559, 128
          %s561 = scalar_lea.hbm %s5, %s560
          %s563 = sshll.u32 %s545, 4
          %s564 = int_to_ptr.vmem [resolvable:$true] %s563
          %566 = dma.vmem_to_hbm [thread:$0]  %s564, 256, %s561, %s542
        $region44: #{tpu_custom_call.1} parent=39 // pred_fallthru
          _
        // Predicated region
        $region45: #{tpu_custom_call.1} parent=39 // pred_check
          %p567 = pneg %p196
        $region46: #{tpu_custom_call.1} parent=39 // pred_check_branch
          %569 = sbr.rel (%p567) target = $region48
        $region47: #{tpu_custom_call.1} parent=39 // pred_region
          %s570 = smul.u32 2, %s29
          %s572 = ssub.s32 512, 512
          %573 = vsyncadd %s547, %s572
          %s574 = smul.addr %s28, 4
          %s575 = sadd.s32 %s570, %s574
          %s576 = smul.addr %s575, 128
          %s577 = scalar_lea.hbm %s6, %s576
          %s578 = sshll.u32 %s550, 4
          %s579 = int_to_ptr.vmem [resolvable:$true] %s578
          %584 = dma.vmem_to_hbm [thread:$0]  %s579, 512, %s577, %s547, 256, 256, 16
        $region48: #{tpu_custom_call.1} parent=39 // pred_fallthru
          _
      $region40: #{tpu_custom_call.1} parent=5 // pred_fallthru
        _
      %p585 = scmp.le.s32.totalorder 2, %s19
      // Predicated region
      $region49: #{tpu_custom_call.1} parent=5 // pred_check
        %p586 = pneg %p585
      $region50: #{tpu_custom_call.1} parent=5 // pred_check_branch
        %588 = sbr.rel (%p586) target = $region52
      $region51: #{tpu_custom_call.1} parent=5 // pred_region
        %s589 = ssub.s32 %s19, 2
        // Predicated region
        $region53: #{tpu_custom_call.1} parent=51 // pred_check
          %p590 = pneg %p174
        $region54: #{tpu_custom_call.1} parent=51 // pred_check_branch
          %592 = sbr.rel (%p590) target = $region56
        $region55: #{tpu_custom_call.1} parent=51 // pred_region
          %s593 = sand.u32 %s159, 1
          %s594 = scalar_lea.sflag [#allocation3], %s593
          %s595 = sand.u32 %s159, 1
          %s596 = smul.addr %s595, 16
          %s597 = scalar_lea.vmem [#allocation2], %s596
          %598 = dma.done %s594, 256
        $region56: #{tpu_custom_call.1} parent=51 // pred_fallthru
          _
        // Predicated region
        $region57: #{tpu_custom_call.1} parent=51 // pred_check
          %p599 = pneg %p202
        $region58: #{tpu_custom_call.1} parent=51 // pred_check_branch
          %601 = sbr.rel (%p599) target = $region60
        $region59: #{tpu_custom_call.1} parent=51 // pred_region
          %s602 = sand.u32 %s187, 1
          %s603 = scalar_lea.sflag [#allocation5], %s602
          %s604 = sand.u32 %s187, 1
          %s605 = smul.addr %s604, 32
          %s606 = scalar_lea.vmem [#allocation4], %s605
          %607 = dma.done %s603, 512
        $region60: #{tpu_custom_call.1} parent=51 // pred_fallthru
          _
      $region52: #{tpu_custom_call.1} parent=5 // pred_fallthru
        _
    $region6: #{tpu_custom_call.1} parent=1 // loop_footer
      %s23 = sadd.s32 1, %s19
    $region7: #{tpu_custom_call.1} parent=1 // loop_footer_branch
      %18 = sbr.rel target = $region3
    $region8: #{tpu_custom_call.1} parent=1 // loop_exit
      _
    %608 = vsyncpa [#allocation3], 1
    %s609 = scalar_lea.sflag [#allocation3], 1
    %610 = vsyncpa %s609, 1
    %611 = vsyncpa [#allocation5], 1
    %s612 = scalar_lea.sflag [#allocation5], 1
    %613 = vsyncpa %s612, 1

</llo_original>
